<compile_context>
chip_gen: v5e
topology: v5e:2x2
jax: 0.10.0
libtpu: 0.0.40
codegen_flags: <defaults>
</compile_context>

<pallas_src>
import functools
import math

import jax
import jax.numpy as jnp
from jax import lax
from jax.experimental import pallas as pl
from jax.experimental.pallas import tpu as pltpu


# --------------------------------------------------------------------------------------
# helpers
# --------------------------------------------------------------------------------------
def _round_up(v, m):
    return (v + m - 1) // m * m


def _vmem_capacity_bytes():
    """Physical VMEM of the local TPU generation; conservative fallback if unknown."""
    try:
        info = pltpu.get_tpu_info()
        for attr in ("vmem_capacity_bytes", "vmem_bytes", "vmem_size_bytes"):
            v = getattr(info, attr, None)
            if v:
                return int(v)
    except Exception:
        pass
    return 64 * 1024 * 1024   # assume the smallest (v7x per-core) VMEM if the query fails


def _buf_bytes(shape, dtype):
    """VMEM bytes of one buffer, with the trailing dims rounded to (sublane, lane) tiles."""
    esz = jnp.dtype(dtype).itemsize
    shape = tuple(int(s) for s in shape)
    if len(shape) < 2:
        shape = (1,) * (2 - len(shape)) + shape
    lead = 1
    for d in shape[:-2]:
        lead *= d
    sub = 32 // esz                 # 8 sublanes for 4B, 16 for 2B, 32 for 1B dtypes
    return lead * _round_up(shape[-2], sub) * _round_up(shape[-1], 128) * esz


# --------------------------------------------------------------------------------------
# kernels
# --------------------------------------------------------------------------------------
def _gcn_batch_kernel(x_ref, adj_ref, w_ref, b_ref, o_ref, *, compute_dtype):
    """Default path: one batch block per grid step, full (Np, Np) adjacency resident."""
    x = x_ref[...]              # (Bb, Np, Fin)  compute_dtype
    adj = adj_ref[...]          # (Bb, Np, Np)   compute_dtype (bf16 stream halves adj DMA)
    w = w_ref[...]              # (Fin, Fp)      compute_dtype
    bias = b_ref[...]           # (1,  Fp)       float32

    bb, n, fin = x.shape
    fp = w.shape[1]

    # Shared feature transform: one (Bb*Np, Fin) @ (Fin, Fp) MXU pass, f32 accumulation.
    support = jnp.dot(x.reshape(bb * n, fin), w,
                      preferred_element_type=jnp.float32).reshape(bb, n, fp)

    # Degree of A_hat = A + I.  The identity is built from iota (no eye input, no eye
    # DMA / VMEM residency); the abs-based formula is kept because adj may be signed.
    # Element-wise normalisation math stays f32 (v5e VPU has no bf16) while the MXU
    # below consumes the raw compute_dtype adjacency.
    rows = lax.broadcasted_iota(jnp.int32, (n, n), 0)
    cols = lax.broadcasted_iota(jnp.int32, (n, n), 1)
    diag = jnp.where(rows == cols, 1.0, 0.0)[None]                   # (1, Np, Np) f32
    deg = jnp.sum(jnp.abs(adj.astype(jnp.float32) + diag), axis=-1, keepdims=True)
    # NOTE: inf when a row of |A+I| sums to 0 — matches the PyTorch reference exactly.
    d = lax.rsqrt(deg)                                               # (Bb, Np, 1), EUP

    s = d * support                                                  # column-scaled, f32
    # A_hat is never materialised: A @ s on the MXU, the I @ s term added exactly in f32.
    t = jnp.einsum("bij,bjf->bif", adj, s.astype(compute_dtype),
                   preferred_element_type=jnp.float32)               # (Bb, Np, Fp)
    out = d * (t + s) + bias
    o_ref[...] = out.astype(o_ref.dtype)


def _gcn_row_tiled_kernel(x_full_ref, x_rows_ref, adj_ref, dcol_ref, drow_ref,
                          w_ref, b_ref, o_ref, *, compute_dtype):
    """Large-N fallback: adjacency row tile (1, TN, Np); d_inv_sqrt is precomputed."""
    x_full = x_full_ref[...]      # (1, Np, Fin)  compute_dtype  (all rows, contraction side)
    x_rows = x_rows_ref[...]      # (1, TN, Fin)  compute_dtype  (this tile's rows)
    adj = adj_ref[...]            # (1, TN, Np)   compute_dtype
    d_col = dcol_ref[...]         # (1, Np, 1)    f32  full normalisation vector (columns)
    d_row = drow_ref[...]         # (1, TN, 1)    f32  this tile's rows
    w = w_ref[...]                # (Fin, Fp)     compute_dtype
    bias = b_ref[...]             # (1,  Fp)      f32

    _, n, fin = x_full.shape
    tn = adj.shape[1]
    fp = w.shape[1]

    support = jnp.dot(x_full.reshape(n, fin), w,
                      preferred_element_type=jnp.float32).reshape(1, n, fp)
    s = (d_col * support).astype(compute_dtype)                      # (1, Np, Fp)

    t = jnp.einsum("bij,bjf->bif", adj, s,
                   preferred_element_type=jnp.float32)               # (1, TN, Fp)

    # Identity contribution for this tile's rows, recomputed exactly in f32 (cheap).
    sup_rows = jnp.dot(x_rows.reshape(tn, fin), w,
                       preferred_element_type=jnp.float32).reshape(1, tn, fp)
    out = d_row * (t + d_row * sup_rows) + bias
    o_ref[...] = out.astype(o_ref.dtype)


# --------------------------------------------------------------------------------------
# wrapper
# --------------------------------------------------------------------------------------
def graph_convolution(x, adj, weight, bias, *, compute_dtype=jnp.float32,
                      force_row_tiling=False, row_tile=None):
    B, N, Fin = x.shape
    Fout = weight.shape[1]
    assert adj.shape == (B, N, N), "adj must be (B, N, N)"

    out_dtype = x.dtype
    cap = max(_vmem_capacity_bytes(), 32 * 1024 * 1024)
    budget = max(int(0.70 * cap), 16 * 1024 * 1024)   # ~90 MiB v5e/v6e, ~45 MiB v7x
    vmem_limit = budget

    # Feature-dim policy: pad only when it pays off (review item 6).
    Fp = _round_up(Fout, 128) if Fout >= 128 else Fout

    # ---- per-step VMEM estimates with padded layouts + double buffering ---------------
    def batch_step_bytes(bb, np_):
        streamed = 2 * (_buf_bytes((bb, np_, np_), compute_dtype)        # adj block
                        + _buf_bytes((bb, np_, Fin), compute_dtype)      # x block
                        + _buf_bytes((bb, np_, Fp), out_dtype))          # out block
        consts = 2 * (_buf_bytes((Fin, Fp), compute_dtype)
                      + _buf_bytes((1, Fp), jnp.float32))
        temps = (_buf_bytes((bb, np_, np_), jnp.float32)                 # f32 |A+I| operand
                 + _buf_bytes((np_, np_), jnp.float32)                   # iota diag mask
                 + 4 * _buf_bytes((bb, np_, Fp), jnp.float32)            # support, s, t, out
                 + _buf_bytes((bb, np_, Fp), compute_dtype)              # s cast for the MXU
                 + 4 * _buf_bytes((bb, np_, 1), jnp.float32))            # deg / d
        return streamed + consts + temps

    def tiled_step_bytes(tn, np_):
        streamed = 2 * (_buf_bytes((1, tn, np_), compute_dtype)
                        + _buf_bytes((1, np_, Fin), compute_dtype)
                        + _buf_bytes((1, tn, Fin), compute_dtype)
                        + _buf_bytes((1, np_, 1), jnp.float32)
                        + _buf_bytes((1, tn, 1), jnp.float32)
                        + _buf_bytes((1, tn, Fp), out_dtype))
        consts = 2 * (_buf_bytes((Fin, Fp), compute_dtype)
                      + _buf_bytes((1, Fp), jnp.float32))
        temps = (2 * _buf_bytes((1, np_, Fp), jnp.float32)               # support, d*support
                 + _buf_bytes((1, np_, Fp), compute_dtype)               # s cast
                 + 3 * _buf_bytes((1, tn, Fp), jnp.float32))             # t, sup_rows, out
        return streamed + consts + temps

    use_tiled = force_row_tiling or (batch_step_bytes(1, _round_up(N, 8)) > budget)
    Np = _round_up(N, 128) if use_tiled else _round_up(N, 8)
    # TODO(synk): for large N where the MXU (not HBM) binds, pad Np to 256 on v6e/v7x.

    # ---- common operand preparation ----------------------------------------------------
    x_c = x.astype(compute_dtype)
    adj_c = adj.astype(compute_dtype)
    if Np != N:
        x_c = jnp.pad(x_c, ((0, 0), (0, Np - N), (0, 0)))
        adj_c = jnp.pad(adj_c, ((0, 0), (0, Np - N), (0, Np - N)))
    w_c = weight.astype(compute_dtype)
    b_c = bias.reshape(1, -1).astype(jnp.float32)
    if Fp != Fout:
        w_c = jnp.pad(w_c, ((0, 0), (0, Fp - Fout)))
        b_c = jnp.pad(b_c, ((0, 0), (0, Fp - Fout)))

    if not use_tiled:
        # -------- default path: grid over batch blocks --------------------------------
        # Largest batch block that fits the budget while keeping grid >= 2 (ideally even)
        # so both TensorCores get work on megacore / v7x parts.
        min_grid = 2 if B >= 2 else 1
        Bb = 1
        for cand in range(B, 0, -1):
            if B % cand or (B // cand) < min_grid:
                continue
            if batch_step_bytes(cand, Np) <= budget:
                Bb = cand
                break

        kernel = functools.partial(_gcn_batch_kernel, compute_dtype=compute_dtype)
        out_p = pl.pallas_call(
            kernel,
            out_shape=jax.ShapeDtypeStruct((B, Np, Fp), out_dtype),
            grid_spec=pltpu.PrefetchScalarGridSpec(
                num_scalar_prefetch=0,
                grid=(B // Bb,),
                in_specs=[
                    pl.BlockSpec((Bb, Np, Fin), lambda b: (b, 0, 0)),
                    pl.BlockSpec((Bb, Np, Np), lambda b: (b, 0, 0)),
                    # W / bias are tiny batch-invariant constants (the big constant, eye,
                    # is gone entirely).  TODO(synk): pipeline_mode=pl.Buffered(1) here
                    # once Fin*Fp grows enough for their double-buffer to matter on v7x.
                    pl.BlockSpec((Fin, Fp), lambda b: (0, 0)),
                    pl.BlockSpec((1, Fp), lambda b: (0, 0)),
                ],
                out_specs=pl.BlockSpec((Bb, Np, Fp), lambda b: (b, 0, 0)),
            ),
            compiler_params=pltpu.CompilerParams(
                dimension_semantics=("parallel",),
                vmem_limit_bytes=vmem_limit,
            ),
        )(x_c, adj_c, w_c, b_c)
    else:
        # -------- large-N fallback: row-tiled grid (B, Np // TN) -----------------------
        if row_tile is not None:
            TN = int(row_tile)
        else:
            TN = 128
            for t in (1024, 512, 256, 128):
                if Np % t == 0 and tiled_step_bytes(t, Np) <= budget:
                    TN = t
                    break
        assert Np % TN == 0 and TN % 8 == 0

        # Full normalisation vector (needed for the column scaling of every row tile),
        # computed once in f32 from the compute_dtype adjacency; abs-based diagonal
        # correction keeps signed adjacencies exact.
        # TODO(synk): fold this into a small Pallas degree pass to avoid the extra
        # XLA-side read of adj at very large N.
        abs_sum = jnp.sum(jnp.abs(adj_c).astype(jnp.float32), axis=-1)
        diag = jnp.diagonal(adj_c, axis1=1, axis2=2).astype(jnp.float32)
        deg = abs_sum + jnp.abs(diag + 1.0) - jnp.abs(diag)
        d_inv = lax.rsqrt(deg)[..., None]                            # (B, Np, 1) f32

        kernel = functools.partial(_gcn_row_tiled_kernel, compute_dtype=compute_dtype)
        out_p = pl.pallas_call(
            kernel,
            out_shape=jax.ShapeDtypeStruct((B, Np, Fp), out_dtype),
            grid_spec=pltpu.PrefetchScalarGridSpec(
                num_scalar_prefetch=0,
                grid=(B, Np // TN),
                in_specs=[
                    pl.BlockSpec((1, Np, Fin), lambda b, i: (b, 0, 0)),   # x, all rows
                    pl.BlockSpec((1, TN, Fin), lambda b, i: (b, i, 0)),   # x, tile rows
                    pl.BlockSpec((1, TN, Np), lambda b, i: (b, i, 0)),    # adj row tile
                    pl.BlockSpec((1, Np, 1), lambda b, i: (b, 0, 0)),     # d_inv, all rows
                    pl.BlockSpec((1, TN, 1), lambda b, i: (b, i, 0)),     # d_inv, tile rows
                    pl.BlockSpec((Fin, Fp), lambda b, i: (0, 0)),
                    pl.BlockSpec((1, Fp), lambda b, i: (0, 0)),
                ],
                out_specs=pl.BlockSpec((1, TN, Fp), lambda b, i: (b, i, 0)),
            ),
            compiler_params=pltpu.CompilerParams(
                dimension_semantics=("parallel", "parallel"),
                vmem_limit_bytes=vmem_limit,
            ),
        )(x_c, x_c, adj_c, d_inv, d_inv, w_c, b_c)

    if Np != N or Fp != Fout:
        return out_p[:, :N, :Fout]
    return out_p


# --------------------------------------------------------------------------------------
# pure-JAX reference (matches the PyTorch forward exactly)
# --------------------------------------------------------------------------------------
def graph_convolution_ref(x, adj, weight, bias):
    B, N, _ = adj.shape
    eye = jnp.eye(N, dtype=adj.dtype)[None]
    adj_post = adj + eye
    deg = jnp.sum(jnp.abs(adj_post), axis=-1)
    d_inv_sqrt = deg ** -0.5
    norm_adj = adj_post * d_inv_sqrt[:, :, None] * d_inv_sqrt[:, None, :]
    support = x @ weight
    return norm_adj @ support + bias


# --------------------------------------------------------------------------------------
# demo / self-test
# --------------------------------------------------------------------------------------
if __name__ == "__main__":
    key = jax.random.PRNGKey(0)
    kx, kadj, kw, kb = jax.random.split(key, 4)

    B, N, Fin, Fout = 2, 16, 8, 32
    x = jax.random.normal(kx, (B, N, Fin), dtype=jnp.float32)
    adj = jax.random.normal(kadj, (B, N, N), dtype=jnp.float32)

    # U(-stdv, stdv) init with stdv = 1/sqrt(out_features), mirroring reset_parameters.
    stdv = 1.0 / math.sqrt(Fout)
    weight = jax.random.uniform(kw, (Fin, Fout), dtype=jnp.float32,
                                minval=-stdv, maxval=stdv)
    bias = jax.random.uniform(kb, (Fout,), dtype=jnp.float32,
                              minval=-stdv, maxval=stdv)

    ref = graph_convolution_ref(x, adj, weight, bias)

    # f32 compute path — exact check against the reference.
    out = jax.block_until_ready(graph_convolution(x, adj, weight, bias))
    assert out.shape == (B, N, Fout)
    assert jnp.allclose(out, ref, atol=1e-5, rtol=1e-5), "f32 mismatch vs reference"

    # bf16 adjacency/feature streaming (f32 accumulation) — halves the dominant adj DMA.
    out_bf16 = jax.block_until_ready(
        graph_convolution(x, adj, weight, bias, compute_dtype=jnp.bfloat16))
    assert out_bf16.shape == (B, N, Fout)
    assert jnp.allclose(out_bf16, ref, atol=5e-2, rtol=5e-2), "bf16 mismatch vs reference"

    # Row-tiled fallback path (the large-N code path), forced at a small test shape.
    N2 = 256
    x2 = jax.random.normal(kx, (B, N2, Fin), dtype=jnp.float32)
    adj2 = jax.random.normal(kadj, (B, N2, N2), dtype=jnp.float32)
    ref2 = graph_convolution_ref(x2, adj2, weight, bias)
    out2 = jax.block_until_ready(
        graph_convolution(x2, adj2, weight, bias,
                          force_row_tiling=True, row_tile=128))
    assert out2.shape == (B, N2, Fout)
    assert jnp.allclose(out2, ref2, atol=1e-4, rtol=1e-4), "tiled f32 mismatch vs reference"

    print("KERNEL_OK")
</pallas_src>

<mosaic_0001>
module attributes {stable_mosaic.version = 11 : i64} {
  func.func @_gcn_batch_kernel(%arg0: i32, %arg1: memref<1x16x8xf32, #tpu.memory_space<vmem>>, %arg2: memref<1x16x16xf32, #tpu.memory_space<vmem>>, %arg3: memref<8x32xf32, #tpu.memory_space<vmem>>, %arg4: memref<1x32xf32, #tpu.memory_space<vmem>>, %arg5: memref<1x16x32xf32, #tpu.memory_space<vmem>>) attributes {dimension_semantics = [#tpu.dimension_semantics<parallel>], iteration_bounds = array<i64: 2>, scalar_prefetch = 0 : i64, scratch_operands = 0 : i64, tpu.core_type = #tpu.core_type<tc>, window_params = [{transform_indices = @transform_0, window_bounds = array<i64: 1, 16, 8>}, {transform_indices = @transform_1, window_bounds = array<i64: 1, 16, 16>}, {pipeline_mode = #tpu.pipeline_mode<synchronous>, transform_indices = @transform_2, window_bounds = array<i64: 8, 32>}, {pipeline_mode = #tpu.pipeline_mode<synchronous>, transform_indices = @transform_3, window_bounds = array<i64: 1, 32>}, {transform_indices = @transform_4, window_bounds = array<i64: 1, 16, 32>}]} {
    %c0 = arith.constant 0 : index
    %c0_0 = arith.constant 0 : index
    %c0_1 = arith.constant 0 : index
    %0 = vector.load %arg1[%c0, %c0_0, %c0_1] : memref<1x16x8xf32, #tpu.memory_space<vmem>>, vector<1x16x8xf32>
    %c0_2 = arith.constant 0 : index
    %c0_3 = arith.constant 0 : index
    %c0_4 = arith.constant 0 : index
    %1 = vector.load %arg2[%c0_2, %c0_3, %c0_4] : memref<1x16x16xf32, #tpu.memory_space<vmem>>, vector<1x16x16xf32>
    %c0_5 = arith.constant 0 : index
    %c0_6 = arith.constant 0 : index
    %2 = vector.load %arg3[%c0_5, %c0_6] : memref<8x32xf32, #tpu.memory_space<vmem>>, vector<8x32xf32>
    %c0_7 = arith.constant 0 : index
    %c0_8 = arith.constant 0 : index
    %3 = vector.load %arg4[%c0_7, %c0_8] : memref<1x32xf32, #tpu.memory_space<vmem>>, vector<1x32xf32>
    %4 = vector.shape_cast %0 : vector<1x16x8xf32> to vector<16x8xf32>
    %cst = arith.constant dense<0.000000e+00> : vector<16x32xf32>
    %5 = tpu.matmul %4, %2, %cst {dimension_numbers = #tpu.dot_dimension_numbers<[1], [0], [0], [1], [0, 0, 1, 1], [], []>} : vector<16x8xf32>, vector<8x32xf32>, vector<16x32xf32> -> vector<16x32xf32>
    %6 = vector.shape_cast %5 : vector<16x32xf32> to vector<1x16x32xf32>
    %7 = tpu.iota {dimensions = array<i32: 0>} : vector<16x16xi32>
    %8 = tpu.iota {dimensions = array<i32: 1>} : vector<16x16xi32>
    %9 = arith.cmpi eq, %7, %8 : vector<16x16xi32>
    %cst_9 = arith.constant 1.000000e+00 : f32
    %cst_10 = arith.constant 0.000000e+00 : f32
    %10 = vector.broadcast %cst_9 : f32 to vector<16x16xf32>
    %11 = vector.broadcast %cst_10 : f32 to vector<16x16xf32>
    %12 = arith.select %9, %10, %11 : vector<16x16xi1>, vector<16x16xf32>
    %13 = vector.shape_cast %12 : vector<16x16xf32> to vector<1x16x16xf32>
    %14 = arith.addf %1, %13 : vector<1x16x16xf32>
    %15 = math.absf %14 : vector<1x16x16xf32>
    %cst_11 = arith.constant dense<0.000000e+00> : vector<1x16xf32>
    %16 = vector.multi_reduction <add>, %15, %cst_11 [2] : vector<1x16x16xf32> to vector<1x16xf32>
    %17 = vector.shape_cast %16 : vector<1x16xf32> to vector<1x16x1xf32>
    %18 = math.rsqrt %17 : vector<1x16x1xf32>
    %19 = vector.broadcast %18 : vector<1x16x1xf32> to vector<1x16x32xf32>
    %20 = arith.mulf %19, %6 : vector<1x16x32xf32>
    "tpu.trace_start"() <{level = 10 : i32, message = "bij,bjf->bif"}> : () -> ()
    %cst_12 = arith.constant dense<0.000000e+00> : vector<1x16x32xf32>
    %21 = tpu.matmul %1, %20, %cst_12 {dimension_numbers = #tpu.dot_dimension_numbers<[2], [1], [1], [2], [0, 0, 0, 1, 1, 2], [0], [0]>} : vector<1x16x16xf32>, vector<1x16x32xf32>, vector<1x16x32xf32> -> vector<1x16x32xf32>
    "tpu.trace_stop"() : () -> ()
    %22 = arith.addf %21, %20 : vector<1x16x32xf32>
    %23 = vector.broadcast %18 : vector<1x16x1xf32> to vector<1x16x32xf32>
    %24 = arith.mulf %23, %22 : vector<1x16x32xf32>
    %25 = vector.shape_cast %3 : vector<1x32xf32> to vector<1x1x32xf32>
    %26 = vector.broadcast %25 : vector<1x1x32xf32> to vector<1x16x32xf32>
    %27 = arith.addf %24, %26 : vector<1x16x32xf32>
    %c0_13 = arith.constant 0 : index
    %c0_14 = arith.constant 0 : index
    %c0_15 = arith.constant 0 : index
    %28 = vector.load %arg5[%c0_13, %c0_14, %c0_15] : memref<1x16x32xf32, #tpu.memory_space<vmem>>, vector<1x16x32xf32>
    tpu.vector_store %arg5[%c0_13, %c0_14, %c0_15], %27 {strides = array<i32>} : memref<1x16x32xf32, #tpu.memory_space<vmem>>, vector<1x16x32xf32>,
    return
  }
  func.func @transform_0(%arg0: i32) -> (i32, i32, i32) {
    %c0_i32 = arith.constant 0 : i32
    %c0_i32_0 = arith.constant 0 : i32
    %c0_i32_1 = arith.constant 0 : i32
    return %arg0, %c0_i32, %c0_i32_0 : i32, i32, i32
  }
  func.func @transform_1(%arg0: i32) -> (i32, i32, i32) {
    %c0_i32 = arith.constant 0 : i32
    %c0_i32_0 = arith.constant 0 : i32
    %c0_i32_1 = arith.constant 0 : i32
    return %arg0, %c0_i32, %c0_i32_0 : i32, i32, i32
  }
  func.func @transform_2(%arg0: i32) -> (i32, i32) {
    %c0_i32 = arith.constant 0 : i32
    %c0_i32_0 = arith.constant 0 : i32
    %c0_i32_1 = arith.constant 0 : i32
    return %c0_i32, %c0_i32_0 : i32, i32
  }
  func.func @transform_3(%arg0: i32) -> (i32, i32) {
    %c0_i32 = arith.constant 0 : i32
    %c0_i32_0 = arith.constant 0 : i32
    %c0_i32_1 = arith.constant 0 : i32
    return %c0_i32, %c0_i32_0 : i32, i32
  }
  func.func @transform_4(%arg0: i32) -> (i32, i32, i32) {
    %c0_i32 = arith.constant 0 : i32
    %c0_i32_0 = arith.constant 0 : i32
    %c0_i32_1 = arith.constant 0 : i32
    return %arg0, %c0_i32, %c0_i32_0 : i32, i32, i32
  }
}

</mosaic_0001>

<llo_original>
// kernel: tpu_custom_call.1
$region0: #{tpu_custom_call.1}
  #allocation0 [shape = 'u32[]', space=smem, size = 0x4, offset = 0x4, fixed_abs, tag = 'smem constant byte address 0x4 - core index']
  #allocation1 [shape = 'u32[72,128]{1,0:T(1,128)}', space=vmem, size = 0x9000, scoped, tag = 'internal scratch']
  %s0 = inlined_call_operand.vmem [shape: f32[2,16,8], index: 0, kind: input, shape index: {}]
  %s1 = inlined_call_operand.vmem [shape: f32[2,16,16], index: 1, kind: input, shape index: {}]
  %s2 = inlined_call_operand.vmem [shape: f32[8,32], index: 2, kind: input, shape index: {}]
  %s3 = inlined_call_operand.vmem [shape: f32[1,32], index: 3, kind: input, shape index: {}]
  %s4 = inlined_call_operand.hbm [shape: f32[2,16,32], index: 4, kind: output, shape index: {}]
  %s5 = sld [smem:[#allocation0]]
  $region49: #{tpu_custom_call.1} parent=0
    _
  %s7 = ssub.s32 1, %s5
  %s8 = scalar_select 0, %s7, %s5
  $region1: #{tpu_custom_call.1} parent=0
    #allocation2 [shape = 'u8[16384]{0}', space=vmem, size = 0x4000, scoped, tag = 'output window, operand 0']
    #allocation3 [shape = 's32[2]{0}', space=sflag, size = 0x8, scoped, tag = 'scoped memory for tpu_custom_call.1']
    %9 = vsyncpa [#allocation3], 0
    %s10 = scalar_lea.sflag [#allocation3], 1
    %11 = vsyncpa %s10, 0
    loop: start=0, step=1, limit=4
    $region2: #{tpu_custom_call.1} parent=1 // loop_pre_header
      _
    $region3: #{tpu_custom_call.1} parent=1 // loop_header
      %s13 = sphi 0, %s17
      %p14 = scmp.ge.s32.totalorder %s13, 4
      %s23 = sphi 0, %s25
      %s26 = sphi 0, %s23
      %s27 = sphi 0, %s26
      %s43 = sphi 0, %s27
      %s49 = sphi 0, %s51
      %s52 = sphi 0, %s49
      %s53 = sphi 0, %s52
      %s69 = sphi 0, %s53
      %s73 = sphi 0, %s73
      %s75 = sphi 0, %s73
      %s76 = sphi 0, %s75
      %s90 = sphi 0, %s76
      %s94 = sphi 0, %s94
      %s96 = sphi 0, %s94
      %s97 = sphi 0, %s96
      %s111 = sphi 0, %s97
      %s117 = sphi 0, %s119
      %s120 = sphi 0, %s117
      %s121 = sphi 0, %s120
      %s137 = sphi 0, %s121
    $region4: #{tpu_custom_call.1} parent=1 // loop_header_branch
      %16 = sbr.rel (%p14) target = $region8
    $region5: #{tpu_custom_call.1} parent=1 // loop_body
      %s18 = ssub.s32 %s13, 1
      %s19 = ssub.s32 %s13, 2
      %s20 = sadd.s32 %s13, 1
      %s21 = ssub.s32 %s13, %s20
      %p22 = scmp.eq.s32.totalorder %s21, 0
      %s24 = sadd.s32 %s23, 1
      %s25 = scalar_select %p22, %s23, %s24
      %p28 = pneg %p22
      %p29 = scmp.eq.s32.totalorder %s13, 1
      %p30 = por %p28, %p29
      %p31 = scmp.ne.s32.totalorder %s23, %s26
      %p32 = scmp.eq.s32.totalorder %s13, 0
      %p33 = por %p31, %p32
      %p34 = scmp.ne.s32.totalorder %s23, %s26
      %p35 = scmp.eq.s32.totalorder %s18, 1
      %p36 = por %p34, %p35
      %p37 = scmp.ne.s32.totalorder %s26, %s27
      %p38 = scmp.eq.s32.totalorder %s18, 0
      %p39 = por %p37, %p38
      %p40 = scmp.ne.s32.totalorder %s26, %s27
      %p41 = scmp.eq.s32.totalorder %s19, 1
      %p42 = por %p40, %p41
      %p44 = scmp.ne.s32.totalorder %s27, %s43
      %p45 = scmp.eq.s32.totalorder %s19, 0
      %p46 = por %p44, %p45
      %s47 = ssub.s32 %s13, %s20
      %p48 = scmp.eq.s32.totalorder %s47, 0
      %s50 = sadd.s32 %s49, 1
      %s51 = scalar_select %p48, %s49, %s50
      %p54 = pneg %p48
      %p55 = scmp.eq.s32.totalorder %s13, 1
      %p56 = por %p54, %p55
      %p57 = scmp.ne.s32.totalorder %s49, %s52
      %p58 = scmp.eq.s32.totalorder %s13, 0
      %p59 = por %p57, %p58
      %p60 = scmp.ne.s32.totalorder %s49, %s52
      %p61 = scmp.eq.s32.totalorder %s18, 1
      %p62 = por %p60, %p61
      %p63 = scmp.ne.s32.totalorder %s52, %s53
      %p64 = scmp.eq.s32.totalorder %s18, 0
      %p65 = por %p63, %p64
      %p66 = scmp.ne.s32.totalorder %s52, %s53
      %p67 = scmp.eq.s32.totalorder %s19, 1
      %p68 = por %p66, %p67
      %p70 = scmp.ne.s32.totalorder %s53, %s69
      %p71 = scmp.eq.s32.totalorder %s19, 0
      %p72 = por %p70, %p71
      %s74 = sadd.s32 %s73, 1
      %p77 = scmp.eq.s32.totalorder %s13, 1
      %p78 = scmp.ne.s32.totalorder %s73, %s75
      %p79 = scmp.eq.s32.totalorder %s13, 0
      %p80 = por %p78, %p79
      %p81 = scmp.ne.s32.totalorder %s73, %s75
      %p82 = scmp.eq.s32.totalorder %s18, 1
      %p83 = por %p81, %p82
      %p84 = scmp.ne.s32.totalorder %s75, %s76
      %p85 = scmp.eq.s32.totalorder %s18, 0
      %p86 = por %p84, %p85
      %p87 = scmp.ne.s32.totalorder %s75, %s76
      %p88 = scmp.eq.s32.totalorder %s19, 1
      %p89 = por %p87, %p88
      %p91 = scmp.ne.s32.totalorder %s76, %s90
      %p92 = scmp.eq.s32.totalorder %s19, 0
      %p93 = por %p91, %p92
      %s95 = sadd.s32 %s94, 1
      %p98 = scmp.eq.s32.totalorder %s13, 1
      %p99 = scmp.ne.s32.totalorder %s94, %s96
      %p100 = scmp.eq.s32.totalorder %s13, 0
      %p101 = por %p99, %p100
      %p102 = scmp.ne.s32.totalorder %s94, %s96
      %p103 = scmp.eq.s32.totalorder %s18, 1
      %p104 = por %p102, %p103
      %p105 = scmp.ne.s32.totalorder %s96, %s97
      %p106 = scmp.eq.s32.totalorder %s18, 0
      %p107 = por %p105, %p106
      %p108 = scmp.ne.s32.totalorder %s96, %s97
      %p109 = scmp.eq.s32.totalorder %s19, 1
      %p110 = por %p108, %p109
      %p112 = scmp.ne.s32.totalorder %s97, %s111
      %p113 = scmp.eq.s32.totalorder %s19, 0
      %p114 = por %p112, %p113
      %s115 = ssub.s32 %s13, %s20
      %p116 = scmp.eq.s32.totalorder %s115, 0
      %s118 = sadd.s32 %s117, 1
      %s119 = scalar_select %p116, %s117, %s118
      %p122 = pneg %p116
      %p123 = scmp.eq.s32.totalorder %s13, 1
      %p124 = por %p122, %p123
      %p125 = scmp.ne.s32.totalorder %s117, %s120
      %p126 = scmp.eq.s32.totalorder %s13, 0
      %p127 = por %p125, %p126
      %p128 = scmp.ne.s32.totalorder %s117, %s120
      %p129 = scmp.eq.s32.totalorder %s18, 1
      %p130 = por %p128, %p129
      %p131 = scmp.ne.s32.totalorder %s120, %s121
      %p132 = scmp.eq.s32.totalorder %s18, 0
      %p133 = por %p131, %p132
      %p134 = scmp.ne.s32.totalorder %s120, %s121
      %p135 = scmp.eq.s32.totalorder %s19, 1
      %p136 = por %p134, %p135
      %p138 = scmp.ne.s32.totalorder %s121, %s137
      %p139 = scmp.eq.s32.totalorder %s19, 0
      %p140 = por %p138, %p139
      %p141 = scmp.le.s32.totalorder 1, %s13
      %p142 = scmp.lt.s32.totalorder %s13, 3
      %p143 = pnand %p141, %p142
      %p144 = pneg %p143
      // Predicated region
      $region9: #{tpu_custom_call.1} parent=5 // pred_check
        _
      $region10: #{tpu_custom_call.1} parent=5 // pred_check_branch
        %146 = sbr.rel (%p143) target = $region12
      $region11: #{tpu_custom_call.1} parent=5 // pred_region
        %s147 = ssub.s32 %s13, 1
        // Predicated region
        $region13: #{tpu_custom_call.1} parent=11 // pred_check
          %p148 = pneg %p86
        $region14: #{tpu_custom_call.1} parent=11 // pred_check_branch
          %150 = sbr.rel (%p148) target = $region16
        $region15: #{tpu_custom_call.1} parent=11 // pred_region
          _
        $region16: #{tpu_custom_call.1} parent=11 // pred_fallthru
          _
        // Predicated region
        $region17: #{tpu_custom_call.1} parent=11 // pred_check
          %p151 = pneg %p107
        $region18: #{tpu_custom_call.1} parent=11 // pred_check_branch
          %153 = sbr.rel (%p151) target = $region20
        $region19: #{tpu_custom_call.1} parent=11 // pred_region
          _
        $region20: #{tpu_custom_call.1} parent=11 // pred_fallthru
          _
      $region12: #{tpu_custom_call.1} parent=5 // pred_fallthru
        _
      %p154 = scmp.lt.s32.totalorder %s13, 2
      // Predicated region
      $region21: #{tpu_custom_call.1} parent=5 // pred_check
        %p155 = pneg %p154
      $region22: #{tpu_custom_call.1} parent=5 // pred_check_branch
        %157 = sbr.rel (%p155) target = $region24
      $region23: #{tpu_custom_call.1} parent=5 // pred_region
        // Predicated region
        $region25: #{tpu_custom_call.1} parent=23 // pred_check
          %p158 = pneg %p33
        $region26: #{tpu_custom_call.1} parent=23 // pred_check_branch
          %160 = sbr.rel (%p158) target = $region28
        $region27: #{tpu_custom_call.1} parent=23 // pred_region
          %p161 = scmp.lt.s32.totalorder %s13, 1
          %s162 = scalar_select %p161, %s13, 1
          %s163 = smul.addr %s162, 2
          %s164 = smul.addr %s163, 8
          %s165 = scalar_lea.vmem %s0, %s164
        $region28: #{tpu_custom_call.1} parent=23 // pred_fallthru
          _
        // Predicated region
        $region29: #{tpu_custom_call.1} parent=23 // pred_check
          %p166 = pneg %p59
        $region30: #{tpu_custom_call.1} parent=23 // pred_check_branch
          %168 = sbr.rel (%p166) target = $region32
        $region31: #{tpu_custom_call.1} parent=23 // pred_region
          %p169 = scmp.lt.s32.totalorder %s13, 1
          %s170 = scalar_select %p169, %s13, 1
          %s171 = smul.addr %s170, 2
          %s172 = smul.addr %s171, 8
          %s173 = scalar_lea.vmem %s1, %s172
        $region32: #{tpu_custom_call.1} parent=23 // pred_fallthru
          _
      $region24: #{tpu_custom_call.1} parent=5 // pred_fallthru
        _
      %p174 = scmp.le.s32.totalorder 1, %s13
      %p175 = scmp.lt.s32.totalorder %s13, 3
      %p176 = pnand %p174, %p175
      %p177 = pneg %p176
      // Predicated region
      $region33: #{tpu_custom_call.1} parent=5 // pred_check
        _
      $region34: #{tpu_custom_call.1} parent=5 // pred_check_branch
        %179 = sbr.rel (%p176) target = $region36
      $region35: #{tpu_custom_call.1} parent=5 // pred_region
        %s180 = ssub.s32 %s13, 1
        %p181 = scmp.lt.s32.totalorder %s18, 1
        %s182 = scalar_select %p181, %s18, 1
        %s183 = smul.addr %s182, 2
        %s184 = smul.addr %s183, 8
        %s185 = scalar_lea.vmem %s0, %s184
        %p186 = pneg %p39
        %p187 = pneg %p36
        %p188 = scmp.lt.s32.totalorder %s18, 1
        %s189 = scalar_select %p188, %s18, 1
        %s190 = smul.addr %s189, 2
        %s191 = smul.addr %s190, 8
        %s192 = scalar_lea.vmem %s1, %s191
        %p193 = pneg %p65
        %p194 = pneg %p62
        %p195 = pneg %p86
        %p196 = pneg %p83
        %p197 = pneg %p107
        %p198 = pneg %p104
        %p199 = pneg %p133
        %p200 = pneg %p130
        %s201 = sand.u32 %s120, 1
        %s202 = scalar_lea.sflag [#allocation3], %s201
        %s203 = sand.u32 %s120, 1
        %s204 = smul.addr %s203, 16
        %s205 = scalar_lea.vmem [#allocation2], %s204
        %p206 = scmp.lt.s32.totalorder %s18, 1
        %s207 = scalar_select %p206, %s18, 1
        %s208 = smul.addr %s207, 2
        %s209 = smul.addr %s208, 8
        %s210 = scalar_lea.vmem %s0, %s209
        %p211 = scmp.lt.s32.totalorder %s18, 1
        %s212 = scalar_select %p211, %s18, 1
        %s213 = smul.addr %s212, 2
        %s214 = smul.addr %s213, 8
        %s215 = scalar_lea.vmem %s1, %s214
        %v216 = vld [vmem:[%s210] sm:$0xff]
        %v217 = vld [vmem:[%s210 + $0x8] sm:$0xff]
        %v218 = vld [vmem:[%s215] sm:$0xff]
        %v219 = vld [vmem:[%s215 + $0x8] sm:$0xff]
        %v220 = vld [vmem:[%s2] sm:$0xff]
        %v221 = vld [vmem:[%s3] sm:$0x1]
        %vm222 = vcmask 64512
        %v224 = vsel %vm222, %v216, 0
        %v227 = vsel %vm222, %v217, 0
        %229 = vmatpush.msra.mxu0 0.0
        %230 = vmatpush.msra.mxu0 0.0
        %231 = vmatpush.msra.mxu0 0.0
        %232 = vmatpush.msra.mxu0 0.0
        %233 = vmatpush.msra.mxu0 0.0
        %234 = vmatpush.msra.mxu0 0.0
        %235 = vmatpush.msra.mxu0 0.0
        %236 = vmatpush.msra.mxu0 0.0
        %237 = vmatpush.msra.mxu0 0.0
        %238 = vmatpush.msra.mxu0 0.0
        %239 = vmatpush.msra.mxu0 0.0
        %240 = vmatpush.msra.mxu0 0.0
        %241 = vmatpush.msra.mxu0 0.0
        %242 = vmatpush.msra.mxu0 0.0
        %243 = vmatpush.msra.mxu0 0.0
        %244 = vmatpush.msra.mxu0 %v220
        %245 = vmatmul.f32.gmra.mxu0 %v224
        %v246 = vpop.f32.mrf.mxu0
        %v247 = vadd.f32 0.0, %v246
        %248 = vmatmul.f32.gmra.mxu0 %v227
        %v249 = vpop.f32.mrf.mxu0
        %v250 = vadd.f32 0.0, %v249
        %251 = vdwg.mxu0
        %v252 = vlaneseq
        %v253 = vshrl.u32 %v252, 7
        %v254 = vadd.s32 %v253, 8
        %v255 = vlaneseq
        %v256 = vand.u32 %v255, 127
        %vm257 = vcmp.eq.s32.totalorder %v253, %v256
        %vm258 = vcmp.eq.s32.totalorder %v254, %v256
        %v259 = vsel %vm257, 1.0, 0.0
        %v260 = vsel %vm258, 1.0, 0.0
        %v261 = vadd.f32 %v218, %v259
        %v262 = vadd.f32 %v219, %v260
        %v263 = vand.u32 2147483647, %v261
        %v264 = vand.u32 2147483647, %v262
        %vm265 = vcmask 130048
        %v266 = vsel %vm265, %v263, 0.0
        %267 = vadd.xlane.f32.xlu0 %v266
        %v268 = vpop.xlane.xlu0 %267
        %v269 = vsel %vm265, %v264, 0.0
        %270 = vadd.xlane.f32.xlu0 %v269
        %v271 = vpop.xlane.xlu0 %270
        %v272 = vrsqrt.pop %v268
        %v273 = vmul.f32 %v272, %v268
        %v274 = vmul.f32 %v273, %v272
        %v275 = vmul.f32 0.5, %v274
        %v276 = vsub.f32 1.5, %v275
        %v277 = vmul.f32 %v272, %v276
        %vm278 = vweird.f32 %v268
        %vm279 = vweird.f32 %v272
        %vm280 = vmor %vm278, %vm279
        %v281 = vsel %vm280, %v272, %v277
        %v282 = vrsqrt.pop %v271
        %v283 = vmul.f32 %v282, %v271
        %v284 = vmul.f32 %v283, %v282
        %v285 = vmul.f32 0.5, %v284
        %v286 = vsub.f32 1.5, %v285
        %v287 = vmul.f32 %v282, %v286
        %vm288 = vweird.f32 %v271
        %vm289 = vweird.f32 %v282
        %vm290 = vmor %vm288, %vm289
        %v291 = vsel %vm290, %v282, %v287
        %v292 = vmul.f32 %v281, %v247
        %v293 = vmul.f32 %v291, %v250
        %v295 = vsel %vm265, %v218, 0
        %v298 = vsel %vm265, %v219, 0
        %300 = vmatpush.msra.mxu0 0.0
        %301 = vmatpush.msra.mxu0 0.0
        %302 = vmatpush.msra.mxu0 0.0
        %303 = vmatpush.msra.mxu0 0.0
        %304 = vmatpush.msra.mxu0 0.0
        %305 = vmatpush.msra.mxu0 0.0
        %306 = vmatpush.msra.mxu0 0.0
        %307 = vmatpush.msra.mxu0 0.0
        %308 = vmatpush.msra.mxu0 0.0
        %309 = vmatpush.msra.mxu0 0.0
        %310 = vmatpush.msra.mxu0 0.0
        %311 = vmatpush.msra.mxu0 0.0
        %312 = vmatpush.msra.mxu0 0.0
        %313 = vmatpush.msra.mxu0 0.0
        %314 = vmatpush.msra.mxu0 %v293
        %315 = vmatpush.msra.mxu0 %v292
        %316 = vmatmul.f32.gmra.mxu0 %v295
        %v317 = vpop.f32.mrf.mxu0
        %v318 = vadd.f32 %v292, %v317
        %319 = vmatmul.f32.gmra.mxu0 %v298
        %v320 = vpop.f32.mrf.mxu0
        %v321 = vadd.f32 %v293, %v320
        %322 = vdwg.mxu0
        %v323 = vmul.f32 %v281, %v318
        %v324 = vmul.f32 %v291, %v321
        %v326 = vperm.slane %v221, 0
        %v328 = vadd.f32 %v323, %v326
        %v329 = vadd.f32 %v324, %v326
        %vm330 = vcmask 261120
        %331 = vst.msk [vmem:[%s205] sm:$0xff] %vm330, %v328
        %332 = vst.msk [vmem:[%s205 + $0x8] sm:$0xff] %vm330, %v329
        %s333 = sand.u32 %s120, 1
        %s334 = scalar_lea.sflag [#allocation3], %s333
        %s335 = sand.u32 %s120, 1
        %s336 = smul.addr %s335, 16
        %s337 = scalar_lea.vmem [#allocation2], %s336
        // Predicated region
        $region37: #{tpu_custom_call.1} parent=35 // pred_check
          %p338 = pneg %p130
        $region38: #{tpu_custom_call.1} parent=35 // pred_check_branch
          %340 = sbr.rel (%p338) target = $region40
        $region39: #{tpu_custom_call.1} parent=35 // pred_region
          %342 = vsyncadd %s334, 0
          %s343 = smul.addr %s18, 2
          %s344 = smul.addr %s343, 8
          %s345 = scalar_lea.hbm %s4, %s344
          %s346 = sshll.u32 %s337, 4
          %s347 = int_to_ptr.vmem [resolvable:$true] %s346
          %s348 = sshll.u32 %s345, 4
          %s349 = int_to_ptr.hbm [resolvable:$true] %s348
          %354 = dma.vmem_to_hbm [thread:$0]  %s347, 256, %s349, %s334, 128, 128, 8
        $region40: #{tpu_custom_call.1} parent=35 // pred_fallthru
          _
      $region36: #{tpu_custom_call.1} parent=5 // pred_fallthru
        _
      %p355 = scmp.le.s32.totalorder 2, %s13
      // Predicated region
      $region41: #{tpu_custom_call.1} parent=5 // pred_check
        %p356 = pneg %p355
      $region42: #{tpu_custom_call.1} parent=5 // pred_check_branch
        %358 = sbr.rel (%p356) target = $region44
      $region43: #{tpu_custom_call.1} parent=5 // pred_region
        %s359 = ssub.s32 %s13, 2
        // Predicated region
        $region45: #{tpu_custom_call.1} parent=43 // pred_check
          %p360 = pneg %p136
        $region46: #{tpu_custom_call.1} parent=43 // pred_check_branch
          %362 = sbr.rel (%p360) target = $region48
        $region47: #{tpu_custom_call.1} parent=43 // pred_region
          %s363 = sand.u32 %s121, 1
          %s364 = scalar_lea.sflag [#allocation3], %s363
          %s365 = sand.u32 %s121, 1
          %s366 = smul.addr %s365, 16
          %s367 = scalar_lea.vmem [#allocation2], %s366
          %369 = dma.done %s364, 256
        $region48: #{tpu_custom_call.1} parent=43 // pred_fallthru
          _
      $region44: #{tpu_custom_call.1} parent=5 // pred_fallthru
        _
    $region6: #{tpu_custom_call.1} parent=1 // loop_footer
      %s17 = sadd.s32 1, %s13
    $region7: #{tpu_custom_call.1} parent=1 // loop_footer_branch
      %12 = sbr.rel target = $region3
    $region8: #{tpu_custom_call.1} parent=1 // loop_exit
      _
    %370 = vsyncpa [#allocation3], 1
    %s371 = scalar_lea.sflag [#allocation3], 1
    %372 = vsyncpa %s371, 1

</llo_original>
